<compile_context>
chip_gen: v6e
topology: v6e:2x2x1
jax: 0.10.0
libtpu: 0.0.40
codegen_flags: <defaults>
</compile_context>

<pallas_src>
import functools

import jax
import jax.numpy as jnp
from jax.experimental import pallas as pl
from jax.experimental.pallas import tpu as pltpu

EPS = 1e-06
D_DIM = 64

LANES = 128
MAX_TILE_ROWS = 512  # 512*128*4B = 256 KiB per f32 buffer


def _gcv_kernel(omega_ref, yhat_ref, y_ref, out_ref, acc_ref, *, n_batch, n_total):
    # omega_ref : SMEM (1,)               f32  -- scalar omega_sum (untiled)
    # yhat_ref  : VMEM (tile_rows, 128)   any  -- lane-dense tile of yhat
    # y_ref     : VMEM (tile_rows, 128)   any  -- lane-dense tile of y
    # out_ref   : SMEM (1, 1)             f32  -- scalar GCV loss (written at last step)
    # acc_ref   : VMEM (1, 128)           f32  -- per-lane partial-sum accumulator
    step = pl.program_id(0)

    @pl.when(step == 0)
    def _init():
        acc_ref[...] = jnp.zeros_like(acc_ref)

    # Upcast inside the kernel: narrow loads, f32 math (v5e VPU has no bf16 ALU).
    diff = yhat_ref[...].astype(jnp.float32) - y_ref[...].astype(jnp.float32)
    acc_ref[...] += jnp.sum(diff * diff, axis=0, keepdims=True)

    @pl.when(step == pl.num_programs(0) - 1)
    def _finalize():
        sse = jnp.sum(acc_ref[...])  # single cross-lane reduce, paid once
        mse = sse / jnp.float32(n_total) + jnp.float32(EPS)
        denom = jnp.float32(1.0) - omega_ref[0] / jnp.float32(n_batch)
        out_ref[0, 0] = mse / denom


def gcv_loss(yhat: jax.Array, y: jax.Array, omega_sum) -> jax.Array:
    """GCV loss. yhat, y: (N, D) arrays (any float dtype). omega_sum: scalar."""
    assert yhat.shape == y.shape and yhat.ndim == 2
    n_batch, d = yhat.shape
    n_total = n_batch * d

    # ---- lane-dense re-layout (row-major reshape is free; zero-pad is inert) ----
    flat_len = pl.cdiv(n_total, LANES) * LANES
    rows = flat_len // LANES
    if rows <= MAX_TILE_ROWS:
        tile_rows = rows                          # single block == full array dims
    else:
        tile_rows = MAX_TILE_ROWS                 # multiple of 8 -> (8,128) aligned
        rows = pl.cdiv(rows, tile_rows) * tile_rows
        flat_len = rows * LANES

    def relayout(a):
        a = a.reshape(-1)
        pad = flat_len - a.shape[0]
        if pad:
            a = jnp.pad(a, (0, pad))
        return a.reshape(rows, LANES)             # keep native dtype (no f32 cast)

    yhat2 = relayout(yhat)
    y2 = relayout(y)
    omega = jnp.reshape(jnp.asarray(omega_sum, dtype=jnp.float32), (1,))

    num_tiles = rows // tile_rows
    kernel = functools.partial(_gcv_kernel, n_batch=n_batch, n_total=n_total)

    grid_spec = pltpu.PrefetchScalarGridSpec(
        num_scalar_prefetch=0,
        grid=(num_tiles,),
        in_specs=[
            pl.BlockSpec(memory_space=pltpu.MemorySpace.SMEM),      # omega (whole)
            pl.BlockSpec((tile_rows, LANES), lambda i: (i, 0)),     # yhat tile
            pl.BlockSpec((tile_rows, LANES), lambda i: (i, 0)),     # y    tile
        ],
        out_specs=pl.BlockSpec((1, 1), lambda i: (0, 0),
                               memory_space=pltpu.MemorySpace.SMEM),
        scratch_shapes=[pltpu.VMEM((1, LANES), jnp.float32)],
    )

    out = pl.pallas_call(
        kernel,
        out_shape=jax.ShapeDtypeStruct((1, 1), jnp.float32),
        grid_spec=grid_spec,
        compiler_params=pltpu.CompilerParams(
            # Reduction axis carries the resident accumulator.
            dimension_semantics=("arbitrary",),
        ),
    )(omega, yhat2, y2)
    return out[0, 0]


def _reference(yhat, y, omega_sum):
    mse = jnp.mean((yhat.astype(jnp.float32) - y.astype(jnp.float32)) ** 2) + EPS
    return mse / (1.0 - omega_sum / yhat.shape[0])


if __name__ == "__main__":
    key = jax.random.PRNGKey(0)

    # --- primary case: batch N=8, feature dim D=D_DIM=64 (matches the module) ---
    N = 8
    k1, k2 = jax.random.split(key)
    yhat = jax.random.normal(k1, (N, D_DIM), dtype=jnp.float32)
    ytru = jax.random.normal(k2, (N, D_DIM), dtype=jnp.float32)
    omega_sum = jnp.float32(2.5)  # keep denominator well-defined

    loss = gcv_loss(yhat, ytru, omega_sum)
    jax.block_until_ready(loss)
    loss_ref = _reference(yhat, ytru, omega_sum)
    assert jnp.allclose(loss, loss_ref, rtol=1e-5, atol=1e-6), (loss, loss_ref)

    # --- padding path (N*D not a multiple of 128) ---
    N2 = 9
    k3, k4 = jax.random.split(k1)
    yh2 = jax.random.normal(k3, (N2, D_DIM), dtype=jnp.float32)
    yt2 = jax.random.normal(k4, (N2, D_DIM), dtype=jnp.float32)
    l2 = gcv_loss(yh2, yt2, jnp.float32(3.0))
    jax.block_until_ready(l2)
    assert jnp.allclose(l2, _reference(yh2, yt2, jnp.float32(3.0)),
                        rtol=1e-5, atol=1e-6)

    # --- multi-tile gridded path (exercises the pipelined reduction) ---
    N3 = 2048
    k5, k6 = jax.random.split(k2)
    yh3 = jax.random.normal(k5, (N3, D_DIM), dtype=jnp.float32)
    yt3 = jax.random.normal(k6, (N3, D_DIM), dtype=jnp.float32)
    l3 = gcv_loss(yh3, yt3, jnp.float32(10.0))
    jax.block_until_ready(l3)
    assert jnp.allclose(l3, _reference(yh3, yt3, jnp.float32(10.0)),
                        rtol=1e-4, atol=1e-6)

    print("KERNEL_OK")
</pallas_src>

<mosaic_0001>
module attributes {stable_mosaic.version = 11 : i64} {
  func.func @_gcv_kernel(%arg0: i32, %arg1: memref<1xf32, #tpu.memory_space<smem>>, %arg2: memref<4x128xf32, #tpu.memory_space<vmem>>, %arg3: memref<4x128xf32, #tpu.memory_space<vmem>>, %arg4: memref<1x1xf32, #tpu.memory_space<smem>>, %arg5: memref<1x128xf32, #tpu.memory_space<vmem>>) attributes {dimension_semantics = [#tpu.dimension_semantics<arbitrary>], iteration_bounds = array<i64: 1>, scalar_prefetch = 0 : i64, scratch_operands = 1 : i64, tpu.core_type = #tpu.core_type<tc>, window_params = [{transform_indices = @transform_0, window_bounds = array<i64: 1>}, {transform_indices = @transform_1, window_bounds = array<i64: 4, 128>}, {transform_indices = @transform_2, window_bounds = array<i64: 4, 128>}, {transform_indices = @transform_3, window_bounds = array<i64: 1, 1>}]} {
    %c0_i32 = arith.constant 0 : i32
    %0 = arith.cmpi eq, %arg0, %c0_i32 : i32
    %1 = arith.extui %0 : i1 to i32
    %c0_i32_0 = arith.constant 0 : i32
    %2 = arith.cmpi ne, %1, %c0_i32_0 : i32
    scf.if %2 {
      %cst_10 = arith.constant 0.000000e+00 : f32
      %15 = vector.broadcast %cst_10 : f32 to vector<1x128xf32>
      %c0_11 = arith.constant 0 : index
      %c0_12 = arith.constant 0 : index
      %16 = vector.load %arg5[%c0_11, %c0_12] : memref<1x128xf32, #tpu.memory_space<vmem>>, vector<1x128xf32>
      tpu.vector_store %arg5[%c0_11, %c0_12], %15 {strides = array<i32>} : memref<1x128xf32, #tpu.memory_space<vmem>>, vector<1x128xf32>,
    } else {
    }
    %c0 = arith.constant 0 : index
    %c0_1 = arith.constant 0 : index
    %3 = vector.load %arg2[%c0, %c0_1] : memref<4x128xf32, #tpu.memory_space<vmem>>, vector<4x128xf32>
    %c0_2 = arith.constant 0 : index
    %c0_3 = arith.constant 0 : index
    %4 = vector.load %arg3[%c0_2, %c0_3] : memref<4x128xf32, #tpu.memory_space<vmem>>, vector<4x128xf32>
    %5 = arith.subf %3, %4 : vector<4x128xf32>
    %c0_4 = arith.constant 0 : index
    %c0_5 = arith.constant 0 : index
    %6 = vector.load %arg5[%c0_4, %c0_5] : memref<1x128xf32, #tpu.memory_space<vmem>>, vector<1x128xf32>
    %7 = arith.mulf %5, %5 : vector<4x128xf32>
    %cst = arith.constant dense<0.000000e+00> : vector<128xf32>
    %8 = vector.multi_reduction <add>, %7, %cst [0] : vector<4x128xf32> to vector<128xf32>
    %9 = vector.shape_cast %8 : vector<128xf32> to vector<1x128xf32>
    %10 = arith.addf %6, %9 : vector<1x128xf32>
    %c0_6 = arith.constant 0 : index
    %c0_7 = arith.constant 0 : index
    %11 = vector.load %arg5[%c0_6, %c0_7] : memref<1x128xf32, #tpu.memory_space<vmem>>, vector<1x128xf32>
    tpu.vector_store %arg5[%c0_6, %c0_7], %10 {strides = array<i32>} : memref<1x128xf32, #tpu.memory_space<vmem>>, vector<1x128xf32>,
    %c0_i32_8 = arith.constant 0 : i32
    %12 = arith.cmpi eq, %arg0, %c0_i32_8 : i32
    %13 = arith.extui %12 : i1 to i32
    %c0_i32_9 = arith.constant 0 : i32
    %14 = arith.cmpi ne, %13, %c0_i32_9 : i32
    scf.if %14 {
      %c0_10 = arith.constant 0 : index
      %c0_11 = arith.constant 0 : index
      %15 = vector.load %arg5[%c0_10, %c0_11] : memref<1x128xf32, #tpu.memory_space<vmem>>, vector<1x128xf32>
      %16 = vector.shape_cast %15 : vector<1x128xf32> to vector<1x1x128xf32>
      %cst_12 = arith.constant dense<0.000000e+00> : vector<1xf32>
      %17 = vector.multi_reduction <add>, %16, %cst_12 [1, 2] : vector<1x1x128xf32> to vector<1xf32>
      %18 = vector.shape_cast %17 : vector<1xf32> to vector<1x1x1xf32>
      %19 = vector.extract %18[0, 0, 0] : f32 from vector<1x1x1xf32>
      %cst_13 = arith.constant 5.120000e+02 : f32
      %20 = arith.divf %19, %cst_13 : f32
      %cst_14 = arith.constant 9.99999997E-7 : f32
      %21 = arith.addf %20, %cst_14 : f32
      %c0_15 = arith.constant 0 : index
      %22 = memref.load %arg1[%c0_15] : memref<1xf32, #tpu.memory_space<smem>>
      %cst_16 = arith.constant 8.000000e+00 : f32
      %23 = arith.divf %22, %cst_16 : f32
      %cst_17 = arith.constant 1.000000e+00 : f32
      %24 = arith.subf %cst_17, %23 : f32
      %25 = arith.divf %21, %24 : f32
      %c0_18 = arith.constant 0 : index
      %c0_19 = arith.constant 0 : index
      %26 = memref.load %arg4[%c0_18, %c0_19] : memref<1x1xf32, #tpu.memory_space<smem>>
      memref.store %25, %arg4[%c0_18, %c0_19] : memref<1x1xf32, #tpu.memory_space<smem>>
    } else {
    }
    return
  }
  func.func @transform_0(%arg0: i32) -> i32 {
    %c0_i32 = arith.constant 0 : i32
    %c0_i32_0 = arith.constant 0 : i32
    return %c0_i32 : i32
  }
  func.func @transform_1(%arg0: i32) -> (i32, i32) {
    %c0_i32 = arith.constant 0 : i32
    %c0_i32_0 = arith.constant 0 : i32
    return %arg0, %c0_i32 : i32, i32
  }
  func.func @transform_2(%arg0: i32) -> (i32, i32) {
    %c0_i32 = arith.constant 0 : i32
    %c0_i32_0 = arith.constant 0 : i32
    return %arg0, %c0_i32 : i32, i32
  }
  func.func @transform_3(%arg0: i32) -> (i32, i32) {
    %c0_i32 = arith.constant 0 : i32
    %c0_i32_0 = arith.constant 0 : i32
    %c0_i32_1 = arith.constant 0 : i32
    return %c0_i32, %c0_i32_0 : i32, i32
  }
}

</mosaic_0001>

<llo_original>
// kernel: tpu_custom_call.1
$region0: #{tpu_custom_call.1}
  #allocation0 [shape = 'u32[]', space=smem, size = 0x4, offset = 0x4, fixed_abs, tag = 'smem constant byte address 0x4 - core index']
  #allocation1 [shape = 'u32[144,128]{1,0:T(1,128)}', space=vmem, size = 0x12000, scoped, tag = 'internal scratch']
  #allocation2 [shape = 'f32[1,128]{1,0:T(1,128)}', space=vmem, size = 0x200, scoped, tag = 'scratch operand']
  #allocation3 [shape = 'f32[1]{0:T(128)S(6)}', space=smem, size = 0x200, scoped, tag = 'scoped memory for tpu_custom_call.1']
  %s0 = inlined_call_operand.<no memory space> [shape: f32[1], index: 0, kind: input, shape index: {}]
  %s1 = inlined_call_operand.hbm [shape: f32[4,128], index: 1, kind: input, shape index: {}]
  %s2 = inlined_call_operand.hbm [shape: f32[4,128], index: 2, kind: input, shape index: {}]
  %s3 = inlined_call_operand.hbm [shape: f32[1,1], index: 3, kind: output, shape index: {}]
  %s4 = sld [smem:[#allocation0]]
  $region38: #{tpu_custom_call.1} parent=0
    _
  %s6 = ssub.s32 1, %s4
  %s7 = scalar_select 0, %s6, %s4
  %8 = sst [smem:[#allocation3]] %s0
  $region1: #{tpu_custom_call.1} parent=0
    #allocation4 [shape = 'u8[2048]{0}', space=vmem, size = 0x800, scoped, tag = 'input window, operand 1, single buffered']
    #allocation5 [shape = 's32[1]{0}', space=sflag, size = 0x4, scoped, tag = 'scoped memory for tpu_custom_call.1']
    #allocation6 [shape = 's32[1]{0}', space=sflag, size = 0x4, scoped, tag = 'scoped memory for tpu_custom_call.1']
    #allocation7 [shape = 'u8[2048]{0}', space=vmem, size = 0x800, scoped, tag = 'input window, operand 2, single buffered']
    #allocation8 [shape = 's32[1]{0}', space=sflag, size = 0x4, scoped, tag = 'scoped memory for tpu_custom_call.1']
    #allocation9 [shape = 'u8[512]{0}', space=smem, size = 0x200, scoped, tag = 'output window, operand 0, single buffered']
    %9 = vsyncpa [#allocation5], 0
    %10 = vsyncpa [#allocation8], 0
    %11 = vsyncpa [#allocation6], 0
    // Predicated region
    $region2: #{tpu_custom_call.1} parent=1 // pred_check
      _
    $region3: #{tpu_custom_call.1} parent=1 // pred_check_branch
      %13 = sbr.rel (0) target = $region5
    $region4: #{tpu_custom_call.1} parent=1 // pred_region
      _
    $region5: #{tpu_custom_call.1} parent=1 // pred_fallthru
      _
    // Predicated region
    $region6: #{tpu_custom_call.1} parent=1 // pred_check
      _
    $region7: #{tpu_custom_call.1} parent=1 // pred_check_branch
      %15 = sbr.rel (0) target = $region9
    $region8: #{tpu_custom_call.1} parent=1 // pred_region
      %s17 = ssub.s32 64, 64
      %18 = vsyncadd [#allocation5], %s17
      %s20 = sshll.u32 [#allocation4], 4
      %s21 = int_to_ptr.vmem [resolvable:$true] %s20
      %23 = dma.hbm_to_vmem [thread:$0]  %s1, 64, %s21, [#allocation5]
    $region9: #{tpu_custom_call.1} parent=1 // pred_fallthru
      _
    // Predicated region
    $region10: #{tpu_custom_call.1} parent=1 // pred_check
      _
    $region11: #{tpu_custom_call.1} parent=1 // pred_check_branch
      %25 = sbr.rel (0) target = $region13
    $region12: #{tpu_custom_call.1} parent=1 // pred_region
      %s27 = ssub.s32 64, 64
      %28 = vsyncadd [#allocation8], %s27
      %s30 = sshll.u32 [#allocation7], 4
      %s31 = int_to_ptr.vmem [resolvable:$true] %s30
      %33 = dma.hbm_to_vmem [thread:$0]  %s2, 64, %s31, [#allocation8]
    $region13: #{tpu_custom_call.1} parent=1 // pred_fallthru
      _
    // Predicated region
    $region14: #{tpu_custom_call.1} parent=1 // pred_check
      _
    $region15: #{tpu_custom_call.1} parent=1 // pred_check_branch
      %35 = sbr.rel (0) target = $region17
    $region16: #{tpu_custom_call.1} parent=1 // pred_region
      %36 = dma.done [#allocation5], 64
    $region17: #{tpu_custom_call.1} parent=1 // pred_fallthru
      _
    // Predicated region
    $region18: #{tpu_custom_call.1} parent=1 // pred_check
      _
    $region19: #{tpu_custom_call.1} parent=1 // pred_check_branch
      %38 = sbr.rel (0) target = $region21
    $region20: #{tpu_custom_call.1} parent=1 // pred_region
      %39 = dma.done [#allocation8], 64
    $region21: #{tpu_custom_call.1} parent=1 // pred_fallthru
      _
    %p40 = scmp.eq.s32.totalorder 0, 0
    // Predicated region
    $region22: #{tpu_custom_call.1} parent=1 // pred_check
      %p41 = pneg %p40
    $region23: #{tpu_custom_call.1} parent=1 // pred_check_branch
      %43 = sbr.rel (%p41) target = $region25
    $region24: #{tpu_custom_call.1} parent=1 // pred_region
      %44 = vst [vmem:[#allocation2] sm:$0x1] 0.0
    $region25: #{tpu_custom_call.1} parent=1 // pred_fallthru
      _
    %v45 = vld [vmem:[#allocation4] sm:$0xf]
    %v46 = vld [vmem:[#allocation7] sm:$0xf]
    %v47 = vsub.f32 %v45, %v46
    %v48 = vld [vmem:[#allocation2] sm:$0x1]
    %v49 = vmul.f32 %v47, %v47
    %vm50 = vcmask 1043456
    %v51 = vsel %vm50, %v49, 0.0
    %v52 = vrot.slane %v51, 4
    %v53 = vadd.f32 %v51, %v52
    %v54 = vrot.slane %v53, 2
    %v55 = vadd.f32 %v53, %v54
    %v56 = vrot.slane %v55, 1
    %v57 = vadd.f32 %v55, %v56
    %v58 = vadd.f32 %v48, %v57
    %59 = vst [vmem:[#allocation2] sm:$0x1] %v58
    // Predicated region
    $region26: #{tpu_custom_call.1} parent=1 // pred_check
      %p60 = pneg %p40
    $region27: #{tpu_custom_call.1} parent=1 // pred_check_branch
      %62 = sbr.rel (%p60) target = $region29
    $region28: #{tpu_custom_call.1} parent=1 // pred_region
      %v63 = vld [vmem:[#allocation2] sm:$0x1]
      %vm64 = vcmask 1040384
      %v65 = vsel %vm64, %v63, 0.0
      %66 = vadd.xlane.f32.xlu0 %v65
      %v67 = vpop.xlane.xlu0 %66
      %v68 = vrot.slane %v67, 4
      %v69 = vadd.f32 %v67, %v68
      %v70 = vrot.slane %v69, 2
      %v71 = vadd.f32 %v69, %v70
      %v72 = vrot.slane %v71, 1
      %v73 = vadd.f32 %v71, %v72
      %s74 = vtos %v73
      %v75 = vrcp.pop 512.0
      %s76 = vtos %v75
      %s77 = smul.f32 %s74, %s76
      %s78 = sadd.f32 %s77, 1e-06
      %s79 = sld [smem:[#allocation3]]
      %v80 = vrcp.pop 8.0
      %s81 = vtos %v80
      %s82 = smul.f32 %s79, %s81
      %s83 = ssub.f32 1.0, %s82
      %v84 = vstv %s83
      %v85 = vrcp.pop %v84
      %s86 = vtos %v85
      %s87 = smul.f32 %s78, %s86
      %s88 = scalar_lea.smem [#allocation9], 0
      %89 = sst [smem:[%s88]] %s87
    $region29: #{tpu_custom_call.1} parent=1 // pred_fallthru
      _
    // Predicated region
    $region30: #{tpu_custom_call.1} parent=1 // pred_check
      _
    $region31: #{tpu_custom_call.1} parent=1 // pred_check_branch
      %91 = sbr.rel (0) target = $region33
    $region32: #{tpu_custom_call.1} parent=1 // pred_region
      %s93 = ssub.s32 16, 16
      %94 = vsyncadd [#allocation6], %s93
      %97 = dma.smem_to_hbm [#allocation9], 16, %s3, [#allocation6]
    $region33: #{tpu_custom_call.1} parent=1 // pred_fallthru
      _
    // Predicated region
    $region34: #{tpu_custom_call.1} parent=1 // pred_check
      _
    $region35: #{tpu_custom_call.1} parent=1 // pred_check_branch
      %99 = sbr.rel (0) target = $region37
    $region36: #{tpu_custom_call.1} parent=1 // pred_region
      %100 = dma.done [#allocation6], 16
    $region37: #{tpu_custom_call.1} parent=1 // pred_fallthru
      _
    %101 = sfence
    %102 = vsyncpa [#allocation5], 1
    %103 = vsyncpa [#allocation8], 1
    %104 = vsyncpa [#allocation6], 1

</llo_original>
